<compile_context>
chip_gen: v6e
topology: v6e:2x2x1
jax: 0.10.0
libtpu: 0.0.40
codegen_flags: <defaults>
</compile_context>

<pallas_src>
import jax
import jax.numpy as jnp
from jax.experimental import pallas as pl
from jax.experimental.pallas import tpu as pltpu


def mlp_kernel(x_ref, w1_ref, b1_ref, w2_ref, b2_ref, w3_ref, b3_ref, o_ref):
    # x tile: (TILE_B, D).  Weights are VMEM-resident across grid steps.
    wdt = w1_ref.dtype  # compute dtype fed to the MXU (f32 or bf16 weights)
    x = x_ref[...].astype(wdt)

    # Layer 1: MXU matmul, f32 accumulation; bias-add + ReLU on the VPU.
    h1 = jnp.dot(x, w1_ref[...], preferred_element_type=jnp.float32) + b1_ref[...]
    h1 = jnp.maximum(h1, 0.0)
    # Dropout(p=0.3): identity at inference time.

    # Layer 2: MXU matmul, f32 accumulation.
    h2 = jnp.dot(h1.astype(wdt), w2_ref[...], preferred_element_type=jnp.float32) + b2_ref[...]
    h2 = jnp.maximum(h2, 0.0)

    # Layer 3 (128 -> 1): VPU broadcast-multiply + cross-lane reduce (no MXU N=1 pass).
    # Result is written as a lane-dense (1, TILE_B) row.
    o = jnp.sum(h2 * w3_ref[...].astype(jnp.float32), axis=-1)  # (TILE_B,)
    o_ref[...] = (o.reshape(1, -1) + b3_ref[...]).astype(o_ref.dtype)


def neural_network_forward(x, params, *, tile_b=256, weight_dtype=None):
    w1, b1, w2, b2, w3, b3 = params
    if weight_dtype is not None:
        w1, w2, w3 = (w.astype(weight_dtype) for w in (w1, w2, w3))

    B, D = x.shape
    H1 = w1.shape[1]          # 512
    H2 = w2.shape[1]          # 128
    w3_row = w3.reshape(1, H2)   # present the (128, 1) weight as a (1, 128) lane row
    b3_11 = b3.reshape(1, 1)

    # Batch tile: >=256 is a good default on v6e/v7x; fall back to the full (small) batch.
    tb = min(tile_b, B)
    if tb != B:
        # (8, 128) layout rules: sublane axis of the x tile and lane axis of the (1, B) output.
        assert tb % 128 == 0, "tile_b must be a multiple of 128 when B > tile_b"
    grid = (pl.cdiv(B, tb),)

    # Keep the fully-resident-weights plan well inside the default scoped-VMEM budget
    # (16 MiB on v5e, 32 MiB on v6e/v7x, 64 MiB physical on v7x).
    resident_bytes = sum(int(a.size) * a.dtype.itemsize
                         for a in (w1, b1, w2, b2, w3_row, b3_11))
    assert resident_bytes < 12 * 1024 * 1024, (
        "weights too large for the fully-resident plan; K-tile the first matmul")

    flops = 2 * B * (D * H1 + H1 * H2 + H2)
    bytes_accessed = (
        int(x.size) * x.dtype.itemsize
        + resident_bytes
        + B * 4  # f32 output
    )

    out_row = pl.pallas_call(
        mlp_kernel,
        grid=grid,
        in_specs=[
            pl.BlockSpec((tb, D), lambda i: (i, 0)),     # x tile, pipelined along B
            pl.BlockSpec((D, H1), lambda i: (0, 0)),     # W1, VMEM-resident
            pl.BlockSpec((1, H1), lambda i: (0, 0)),     # b1
            pl.BlockSpec((H1, H2), lambda i: (0, 0)),    # W2, VMEM-resident
            pl.BlockSpec((1, H2), lambda i: (0, 0)),     # b2
            pl.BlockSpec((1, H2), lambda i: (0, 0)),     # w3 as a (1, 128) row
            pl.BlockSpec((1, 1), lambda i: (0, 0)),      # b3 scalar
        ],
        out_specs=pl.BlockSpec((1, tb), lambda i: (0, i)),   # lane-dense output slab
        out_shape=jax.ShapeDtypeStruct((1, B), jnp.float32),
        compiler_params=pltpu.CompilerParams(
            dimension_semantics=("parallel",)),              # megacore split on v7x
        cost_estimate=pl.CostEstimate(
            flops=flops, transcendentals=0, bytes_accessed=bytes_accessed),
    )(x, w1, b1, w2, b2, w3_row, b3_11)

    return out_row.reshape(B, 1)


def init_params(key, input_dim):
    # Deterministic PyTorch-style Linear init: U(-1/sqrt(fan_in), 1/sqrt(fan_in)).
    def linear(key, fan_in, fan_out):
        kw, kb = jax.random.split(key)
        bound = 1.0 / (fan_in ** 0.5)
        w = jax.random.uniform(kw, (fan_in, fan_out), jnp.float32, -bound, bound)
        b = jax.random.uniform(kb, (1, fan_out), jnp.float32, -bound, bound)
        return w, b

    k1, k2, k3 = jax.random.split(key, 3)
    w1, b1 = linear(k1, input_dim, 512)
    w2, b2 = linear(k2, 512, 128)
    w3, b3 = linear(k3, 128, 1)
    return (w1, b1, w2, b2, w3, b3)


def reference_forward(x, params):
    w1, b1, w2, b2, w3, b3 = params
    h1 = jnp.maximum(x @ w1 + b1, 0.0)
    h2 = jnp.maximum(h1 @ w2 + b2, 0.0)
    return h2 @ w3 + b3


if __name__ == "__main__":
    key = jax.random.PRNGKey(0)
    k_params, k_x1, k_x2 = jax.random.split(key, 3)

    input_dim = 32
    params = init_params(k_params, input_dim)

    # Small-batch smoke test (single grid step, tile == B).
    x_small = jax.random.normal(k_x1, (8, input_dim), dtype=jnp.float32)
    out_small = jax.block_until_ready(neural_network_forward(x_small, params))
    ref_small = reference_forward(x_small, params)
    assert out_small.shape == (8, 1), out_small.shape
    assert jnp.allclose(out_small, ref_small, atol=1e-5, rtol=1e-5), "f32 small-batch mismatch"

    # Larger batch: 2 grid steps, weights VMEM-resident, batch axis parallel (megacore on v7x).
    x_big = jax.random.normal(k_x2, (512, input_dim), dtype=jnp.float32)
    out_big = jax.block_until_ready(neural_network_forward(x_big, params))
    ref_big = reference_forward(x_big, params)
    assert out_big.shape == (512, 1), out_big.shape
    assert jnp.allclose(out_big, ref_big, atol=1e-4, rtol=1e-4), "f32 big-batch mismatch"

    # bf16 weight traffic (halves weight DMA bytes); f32 accumulation, looser tolerance.
    out_bf16 = jax.block_until_ready(
        neural_network_forward(x_big, params, weight_dtype=jnp.bfloat16))
    assert jnp.allclose(out_bf16, ref_big, atol=3e-2, rtol=3e-2), "bf16 big-batch mismatch"

    print("KERNEL_OK")
</pallas_src>

<mosaic_0001>
module attributes {stable_mosaic.version = 11 : i64} {
  func.func @mlp_kernel(%arg0: i32, %arg1: memref<8x32xf32, #tpu.memory_space<vmem>>, %arg2: memref<32x512xf32, #tpu.memory_space<vmem>>, %arg3: memref<1x512xf32, #tpu.memory_space<vmem>>, %arg4: memref<512x128xf32, #tpu.memory_space<vmem>>, %arg5: memref<1x128xf32, #tpu.memory_space<vmem>>, %arg6: memref<1x128xf32, #tpu.memory_space<vmem>>, %arg7: memref<1x1xf32, #tpu.memory_space<vmem>>, %arg8: memref<1x8xf32, #tpu.memory_space<vmem>>) attributes {dimension_semantics = [#tpu.dimension_semantics<parallel>], iteration_bounds = array<i64: 1>, scalar_prefetch = 0 : i64, scratch_operands = 0 : i64, tpu.core_type = #tpu.core_type<tc>, window_params = [{transform_indices = @transform_0, window_bounds = array<i64: 8, 32>}, {pipeline_mode = #tpu.pipeline_mode<synchronous>, transform_indices = @transform_1, window_bounds = array<i64: 32, 512>}, {pipeline_mode = #tpu.pipeline_mode<synchronous>, transform_indices = @transform_2, window_bounds = array<i64: 1, 512>}, {pipeline_mode = #tpu.pipeline_mode<synchronous>, transform_indices = @transform_3, window_bounds = array<i64: 512, 128>}, {pipeline_mode = #tpu.pipeline_mode<synchronous>, transform_indices = @transform_4, window_bounds = array<i64: 1, 128>}, {pipeline_mode = #tpu.pipeline_mode<synchronous>, transform_indices = @transform_5, window_bounds = array<i64: 1, 128>}, {pipeline_mode = #tpu.pipeline_mode<synchronous>, transform_indices = @transform_6, window_bounds = array<i64: 1, 1>}, {transform_indices = @transform_7, window_bounds = array<i64: 1, 8>}]} {
    %c0 = arith.constant 0 : index
    %c0_0 = arith.constant 0 : index
    %0 = vector.load %arg1[%c0, %c0_0] : memref<8x32xf32, #tpu.memory_space<vmem>>, vector<8x32xf32>
    %c0_1 = arith.constant 0 : index
    %c0_2 = arith.constant 0 : index
    %1 = vector.load %arg2[%c0_1, %c0_2] : memref<32x512xf32, #tpu.memory_space<vmem>>, vector<32x512xf32>
    %cst = arith.constant dense<0.000000e+00> : vector<8x512xf32>
    %2 = tpu.matmul %0, %1, %cst {dimension_numbers = #tpu.dot_dimension_numbers<[1], [0], [0], [1], [0, 0, 1, 1], [], []>} : vector<8x32xf32>, vector<32x512xf32>, vector<8x512xf32> -> vector<8x512xf32>
    %c0_3 = arith.constant 0 : index
    %c0_4 = arith.constant 0 : index
    %3 = vector.load %arg3[%c0_3, %c0_4] : memref<1x512xf32, #tpu.memory_space<vmem>>, vector<1x512xf32>
    %4 = vector.broadcast %3 : vector<1x512xf32> to vector<8x512xf32>
    %5 = arith.addf %2, %4 : vector<8x512xf32>
    %cst_5 = arith.constant 0.000000e+00 : f32
    %6 = vector.broadcast %cst_5 : f32 to vector<8x512xf32>
    %7 = arith.maximumf %5, %6 : vector<8x512xf32>
    %c0_6 = arith.constant 0 : index
    %c0_7 = arith.constant 0 : index
    %8 = vector.load %arg4[%c0_6, %c0_7] : memref<512x128xf32, #tpu.memory_space<vmem>>, vector<512x128xf32>
    %cst_8 = arith.constant dense<0.000000e+00> : vector<8x128xf32>
    %9 = tpu.matmul %7, %8, %cst_8 {dimension_numbers = #tpu.dot_dimension_numbers<[1], [0], [0], [1], [0, 0, 1, 1], [], []>} : vector<8x512xf32>, vector<512x128xf32>, vector<8x128xf32> -> vector<8x128xf32>
    %c0_9 = arith.constant 0 : index
    %c0_10 = arith.constant 0 : index
    %10 = vector.load %arg5[%c0_9, %c0_10] : memref<1x128xf32, #tpu.memory_space<vmem>>, vector<1x128xf32>
    %11 = vector.broadcast %10 : vector<1x128xf32> to vector<8x128xf32>
    %12 = arith.addf %9, %11 : vector<8x128xf32>
    %cst_11 = arith.constant 0.000000e+00 : f32
    %13 = vector.broadcast %cst_11 : f32 to vector<8x128xf32>
    %14 = arith.maximumf %12, %13 : vector<8x128xf32>
    %c0_12 = arith.constant 0 : index
    %c0_13 = arith.constant 0 : index
    %15 = vector.load %arg6[%c0_12, %c0_13] : memref<1x128xf32, #tpu.memory_space<vmem>>, vector<1x128xf32>
    %16 = vector.broadcast %15 : vector<1x128xf32> to vector<8x128xf32>
    %17 = arith.mulf %14, %16 : vector<8x128xf32>
    %cst_14 = arith.constant dense<0.000000e+00> : vector<8xf32>
    %18 = vector.multi_reduction <add>, %17, %cst_14 [1] : vector<8x128xf32> to vector<8xf32>
    %19 = vector.shape_cast %18 : vector<8xf32> to vector<1x8xf32>
    %c0_15 = arith.constant 0 : index
    %c0_16 = arith.constant 0 : index
    %20 = vector.load %arg7[%c0_15, %c0_16] : memref<1x1xf32, #tpu.memory_space<vmem>>, vector<1x1xf32>
    %21 = vector.broadcast %20 : vector<1x1xf32> to vector<1x8xf32>
    %22 = arith.addf %19, %21 : vector<1x8xf32>
    %c0_17 = arith.constant 0 : index
    %c0_18 = arith.constant 0 : index
    %23 = vector.load %arg8[%c0_17, %c0_18] : memref<1x8xf32, #tpu.memory_space<vmem>>, vector<1x8xf32>
    tpu.vector_store %arg8[%c0_17, %c0_18], %22 {strides = array<i32>} : memref<1x8xf32, #tpu.memory_space<vmem>>, vector<1x8xf32>,
    return
  }
  func.func @transform_0(%arg0: i32) -> (i32, i32) {
    %c0_i32 = arith.constant 0 : i32
    %c0_i32_0 = arith.constant 0 : i32
    return %arg0, %c0_i32 : i32, i32
  }
  func.func @transform_1(%arg0: i32) -> (i32, i32) {
    %c0_i32 = arith.constant 0 : i32
    %c0_i32_0 = arith.constant 0 : i32
    %c0_i32_1 = arith.constant 0 : i32
    return %c0_i32, %c0_i32_0 : i32, i32
  }
  func.func @transform_2(%arg0: i32) -> (i32, i32) {
    %c0_i32 = arith.constant 0 : i32
    %c0_i32_0 = arith.constant 0 : i32
    %c0_i32_1 = arith.constant 0 : i32
    return %c0_i32, %c0_i32_0 : i32, i32
  }
  func.func @transform_3(%arg0: i32) -> (i32, i32) {
    %c0_i32 = arith.constant 0 : i32
    %c0_i32_0 = arith.constant 0 : i32
    %c0_i32_1 = arith.constant 0 : i32
    return %c0_i32, %c0_i32_0 : i32, i32
  }
  func.func @transform_4(%arg0: i32) -> (i32, i32) {
    %c0_i32 = arith.constant 0 : i32
    %c0_i32_0 = arith.constant 0 : i32
    %c0_i32_1 = arith.constant 0 : i32
    return %c0_i32, %c0_i32_0 : i32, i32
  }
  func.func @transform_5(%arg0: i32) -> (i32, i32) {
    %c0_i32 = arith.constant 0 : i32
    %c0_i32_0 = arith.constant 0 : i32
    %c0_i32_1 = arith.constant 0 : i32
    return %c0_i32, %c0_i32_0 : i32, i32
  }
  func.func @transform_6(%arg0: i32) -> (i32, i32) {
    %c0_i32 = arith.constant 0 : i32
    %c0_i32_0 = arith.constant 0 : i32
    %c0_i32_1 = arith.constant 0 : i32
    return %c0_i32, %c0_i32_0 : i32, i32
  }
  func.func @transform_7(%arg0: i32) -> (i32, i32) {
    %c0_i32 = arith.constant 0 : i32
    %c0_i32_0 = arith.constant 0 : i32
    return %c0_i32, %arg0 : i32, i32
  }
}

</mosaic_0001>

<llo_original>
// kernel: tpu_custom_call.1
$region0: #{tpu_custom_call.1}
  #allocation0 [shape = 'u32[]', space=smem, size = 0x4, offset = 0x4, fixed_abs, tag = 'smem constant byte address 0x4 - core index']
  #allocation1 [shape = 'u32[144,128]{1,0:T(1,128)}', space=vmem, size = 0x12000, scoped, tag = 'internal scratch']
  #allocation2 [shape = 'f32[1,1]{1,0:T(1,128)S(1)}', space=vmem, size = 0x200, scoped, tag = 'scoped memory for tpu_custom_call.1']
  %s0 = inlined_call_operand.hbm [shape: f32[8,32], index: 0, kind: input, shape index: {}]
  %s1 = inlined_call_operand.hbm [shape: f32[32,512], index: 1, kind: input, shape index: {}]
  %s2 = inlined_call_operand.vmem [shape: f32[1,512], index: 2, kind: input, shape index: {}]
  %s3 = inlined_call_operand.hbm [shape: f32[512,128], index: 3, kind: input, shape index: {}]
  %s4 = inlined_call_operand.vmem [shape: f32[1,128], index: 4, kind: input, shape index: {}]
  %s5 = inlined_call_operand.vmem [shape: f32[1,128], index: 5, kind: input, shape index: {}]
  %s6 = inlined_call_operand.<no memory space> [shape: f32[1,1], index: 6, kind: input, shape index: {}]
  %s7 = inlined_call_operand.hbm [shape: f32[1,8], index: 7, kind: output, shape index: {}]
  %s8 = sld [smem:[#allocation0]]
  $region50: #{tpu_custom_call.1} parent=0
    _
  %s10 = ssub.s32 1, %s8
  %s11 = scalar_select 0, %s10, %s8
  %v12 = vstv %s6
  %13 = vst [vmem:[#allocation2] sm:$0x1] %v12
  $region1: #{tpu_custom_call.1} parent=0
    #allocation3 [shape = 'u8[4096]{0}', space=vmem, size = 0x1000, scoped, tag = 'input window, operand 0, single buffered']
    #allocation4 [shape = 's32[1]{0}', space=sflag, size = 0x4, scoped, tag = 'scoped memory for tpu_custom_call.1']
    #allocation5 [shape = 's32[1]{0}', space=sflag, size = 0x4, scoped, tag = 'scoped memory for tpu_custom_call.1']
    #allocation6 [shape = 'u8[65536]{0}', space=vmem, size = 0x10000, scoped, tag = 'input window, operand 1, single buffered']
    #allocation7 [shape = 's32[1]{0}', space=sflag, size = 0x4, scoped, tag = 'scoped memory for tpu_custom_call.1']
    #allocation8 [shape = 'u8[262144]{0}', space=vmem, size = 0x40000, scoped, tag = 'input window, operand 3, single buffered']
    #allocation9 [shape = 'u8[512]{0}', space=vmem, size = 0x400, scoped, tag = 'output window, operand 0, single buffered']
    %14 = vsyncpa [#allocation4], 0
    %15 = vsyncpa [#allocation7], 0
    %16 = vsyncpa [#allocation5], 0
    // Predicated region
    $region2: #{tpu_custom_call.1} parent=1 // pred_check
      _
    $region3: #{tpu_custom_call.1} parent=1 // pred_check_branch
      %18 = sbr.rel (0) target = $region5
    $region4: #{tpu_custom_call.1} parent=1 // pred_region
      %s20 = ssub.s32 128, 128
      %21 = vsyncadd [#allocation4], %s20
      %s23 = sshll.u32 [#allocation3], 4
      %s24 = int_to_ptr.vmem [resolvable:$true] %s23
      %26 = dma.hbm_to_vmem [thread:$0]  %s0, 128, %s24, [#allocation4]
    $region5: #{tpu_custom_call.1} parent=1 // pred_fallthru
      _
    // Predicated region
    $region6: #{tpu_custom_call.1} parent=1 // pred_check
      _
    $region7: #{tpu_custom_call.1} parent=1 // pred_check_branch
      %28 = sbr.rel (0) target = $region9
    $region8: #{tpu_custom_call.1} parent=1 // pred_region
      %s30 = ssub.s32 2048, 2048
      %31 = vsyncadd [#allocation7], %s30
      %s32 = sshll.u32 [#allocation6], 4
      %s33 = int_to_ptr.vmem [resolvable:$true] %s32
      %38 = dma.hbm_to_vmem [thread:$0]  %s1, 2048, %s33, [#allocation7], 512, 512, 32
    $region9: #{tpu_custom_call.1} parent=1 // pred_fallthru
      _
    // Predicated region
    $region10: #{tpu_custom_call.1} parent=1 // pred_check
      _
    $region11: #{tpu_custom_call.1} parent=1 // pred_check_branch
      %40 = sbr.rel (0) target = $region13
    $region12: #{tpu_custom_call.1} parent=1 // pred_region
      _
    $region13: #{tpu_custom_call.1} parent=1 // pred_fallthru
      _
    // Predicated region
    $region14: #{tpu_custom_call.1} parent=1 // pred_check
      _
    $region15: #{tpu_custom_call.1} parent=1 // pred_check_branch
      %42 = sbr.rel (0) target = $region17
    $region16: #{tpu_custom_call.1} parent=1 // pred_region
      %s44 = ssub.s32 8192, 8192
      %45 = vsyncadd [#allocation7], %s44
      %s46 = sshll.u32 [#allocation8], 4
      %s47 = int_to_ptr.vmem [resolvable:$true] %s46
      %52 = dma.hbm_to_vmem [thread:$0]  %s3, 8192, %s47, [#allocation7], 128, 128, 8
    $region17: #{tpu_custom_call.1} parent=1 // pred_fallthru
      _
    // Predicated region
    $region18: #{tpu_custom_call.1} parent=1 // pred_check
      _
    $region19: #{tpu_custom_call.1} parent=1 // pred_check_branch
      %54 = sbr.rel (0) target = $region21
    $region20: #{tpu_custom_call.1} parent=1 // pred_region
      _
    $region21: #{tpu_custom_call.1} parent=1 // pred_fallthru
      _
    // Predicated region
    $region22: #{tpu_custom_call.1} parent=1 // pred_check
      _
    $region23: #{tpu_custom_call.1} parent=1 // pred_check_branch
      %56 = sbr.rel (0) target = $region25
    $region24: #{tpu_custom_call.1} parent=1 // pred_region
      _
    $region25: #{tpu_custom_call.1} parent=1 // pred_fallthru
      _
    // Predicated region
    $region26: #{tpu_custom_call.1} parent=1 // pred_check
      _
    $region27: #{tpu_custom_call.1} parent=1 // pred_check_branch
      %58 = sbr.rel (0) target = $region29
    $region28: #{tpu_custom_call.1} parent=1 // pred_region
      _
    $region29: #{tpu_custom_call.1} parent=1 // pred_fallthru
      _
    // Predicated region
    $region30: #{tpu_custom_call.1} parent=1 // pred_check
      _
    $region31: #{tpu_custom_call.1} parent=1 // pred_check_branch
      %60 = sbr.rel (0) target = $region33
    $region32: #{tpu_custom_call.1} parent=1 // pred_region
      %61 = dma.done [#allocation4], 128
    $region33: #{tpu_custom_call.1} parent=1 // pred_fallthru
      _
    // Predicated region
    $region34: #{tpu_custom_call.1} parent=1 // pred_check
      _
    $region35: #{tpu_custom_call.1} parent=1 // pred_check_branch
      %63 = sbr.rel (0) target = $region37
    $region36: #{tpu_custom_call.1} parent=1 // pred_region
      %64 = dma.done [#allocation7], 2048
    $region37: #{tpu_custom_call.1} parent=1 // pred_fallthru
      _
    // Predicated region
    $region38: #{tpu_custom_call.1} parent=1 // pred_check
      _
    $region39: #{tpu_custom_call.1} parent=1 // pred_check_branch
      %66 = sbr.rel (0) target = $region41
    $region40: #{tpu_custom_call.1} parent=1 // pred_region
      %67 = dma.done [#allocation7], 8192
    $region41: #{tpu_custom_call.1} parent=1 // pred_fallthru
      _
    %v68 = vld [vmem:[#allocation3] sm:$0xff]
    %v69 = vld [vmem:[#allocation6] sm:$0xff]
    %v70 = vld [vmem:[#allocation6 + $0x8] sm:$0xff]
    %v71 = vld [vmem:[#allocation6 + $0x10] sm:$0xff]
    %v72 = vld [vmem:[#allocation6 + $0x18] sm:$0xff]
    %v73 = vld [vmem:[#allocation6 + $0x20] sm:$0xff]
    %v74 = vld [vmem:[#allocation6 + $0x28] sm:$0xff]
    %v75 = vld [vmem:[#allocation6 + $0x30] sm:$0xff]
    %v76 = vld [vmem:[#allocation6 + $0x38] sm:$0xff]
    %v77 = vld [vmem:[#allocation6 + $0x40] sm:$0xff]
    %v78 = vld [vmem:[#allocation6 + $0x48] sm:$0xff]
    %v79 = vld [vmem:[#allocation6 + $0x50] sm:$0xff]
    %v80 = vld [vmem:[#allocation6 + $0x58] sm:$0xff]
    %v81 = vld [vmem:[#allocation6 + $0x60] sm:$0xff]
    %v82 = vld [vmem:[#allocation6 + $0x68] sm:$0xff]
    %v83 = vld [vmem:[#allocation6 + $0x70] sm:$0xff]
    %v84 = vld [vmem:[#allocation6 + $0x78] sm:$0xff]
    %v85 = vld [vmem:[%s2] sm:$0xf]
    %v87 = vlaneseq
    %v88 = vshrl.u32 %v87, 7
    %v89 = vsub.s32 0, %v88
    %v90 = vrot.slane %v85, %v89
    %v91 = vlaneseq
    %v92 = vshrl.u32 %v91, 7
    %v93 = vsub.s32 1, %v92
    %v94 = vrot.slane %v85, %v93
    %v95 = vlaneseq
    %v96 = vshrl.u32 %v95, 7
    %v97 = vsub.s32 2, %v96
    %v98 = vrot.slane %v85, %v97
    %v99 = vlaneseq
    %v100 = vshrl.u32 %v99, 7
    %v101 = vsub.s32 3, %v100
    %v102 = vrot.slane %v85, %v101
    %vm107 = vcmask 261120
    %v109 = vsel %vm107, %v68, 0
    %111 = vmatprep.subr.mxu0 0.0
    %112 = vmatpush1.msra.mxu0 0.0
    %113 = vmatprep.subr.mxu0 0.0
    %114 = vmatpush1.msra.mxu0 0.0
    %115 = vmatprep.subr.mxu0 0.0
    %116 = vmatpush1.msra.mxu0 0.0
    %117 = vmatprep.subr.mxu0 0.0
    %118 = vmatpush1.msra.mxu0 0.0
    %119 = vmatprep.subr.mxu0 0.0
    %120 = vmatpush1.msra.mxu0 0.0
    %121 = vmatprep.subr.mxu0 0.0
    %122 = vmatpush1.msra.mxu0 0.0
    %123 = vmatprep.subr.mxu0 0.0
    %124 = vmatpush1.msra.mxu0 0.0
    %125 = vmatprep.subr.mxu0 0.0
    %126 = vmatpush1.msra.mxu0 0.0
    %127 = vmatprep.subr.mxu0 0.0
    %128 = vmatpush1.msra.mxu0 0.0
    %129 = vmatprep.subr.mxu0 0.0
    %130 = vmatpush1.msra.mxu0 0.0
    %131 = vmatprep.subr.mxu0 0.0
    %132 = vmatpush1.msra.mxu0 0.0
    %133 = vmatprep.subr.mxu0 0.0
    %134 = vmatpush1.msra.mxu0 0.0
    %135 = vmatprep.subr.mxu0 %v82
    %136 = vmatpush1.msra.mxu0 %v81
    %137 = vmatprep.subr.mxu0 %v78
    %138 = vmatpush1.msra.mxu0 %v77
    %139 = vmatprep.subr.mxu0 %v74
    %140 = vmatpush1.msra.mxu0 %v73
    %141 = vmatprep.subr.mxu0 %v70
    %142 = vmatpush1.msra.mxu0 %v69
    %143 = vmatprep.subr.mxu0 0.0
    %144 = vmatpush2.msra.mxu0 0.0
    %145 = vmatprep.subr.mxu0 0.0
    %146 = vmatpush2.msra.mxu0 0.0
    %147 = vmatprep.subr.mxu0 0.0
    %148 = vmatpush2.msra.mxu0 0.0
    %149 = vmatprep.subr.mxu0 0.0
    %150 = vmatpush2.msra.mxu0 0.0
    %151 = vmatprep.subr.mxu0 0.0
    %152 = vmatpush2.msra.mxu0 0.0
    %153 = vmatprep.subr.mxu0 0.0
    %154 = vmatpush2.msra.mxu0 0.0
    %155 = vmatprep.subr.mxu0 0.0
    %156 = vmatpush2.msra.mxu0 0.0
    %157 = vmatprep.subr.mxu0 0.0
    %158 = vmatpush2.msra.mxu0 0.0
    %159 = vmatprep.subr.mxu0 0.0
    %160 = vmatpush2.msra.mxu0 0.0
    %161 = vmatprep.subr.mxu0 0.0
    %162 = vmatpush2.msra.mxu0 0.0
    %163 = vmatprep.subr.mxu0 0.0
    %164 = vmatpush2.msra.mxu0 0.0
    %165 = vmatprep.subr.mxu0 0.0
    %166 = vmatpush2.msra.mxu0 0.0
    %167 = vmatprep.subr.mxu0 0.0
    %168 = vmatpush2.msra.mxu0 0.0
    %169 = vmatprep.subr.mxu0 0.0
    %170 = vmatpush2.msra.mxu0 0.0
    %171 = vmatprep.subr.mxu0 0.0
    %172 = vmatpush2.msra.mxu0 0.0
    %173 = vmatprep.subr.mxu0 0.0
    %174 = vmatpush2.msra.mxu0 0.0
    %175 = vmatprep.mubr.f32.mxu0 0.0
    %176 = vmatmul.mubr.f32.gmra.mxu0 %v109
    %v177 = vpop.f32.mrf.mxu0
    %v178 = vadd.f32 %v90, %v177
    %v179 = vpop.f32.mrf.mxu0
    %v180 = vadd.f32 %v94, %v179
    %181 = vdwg.mxu0
    %182 = vmatprep.subr.mxu0 0.0
    %183 = vmatpush1.msra.mxu0 0.0
    %184 = vmatprep.subr.mxu0 0.0
    %185 = vmatpush1.msra.mxu0 0.0
    %186 = vmatprep.subr.mxu0 0.0
    %187 = vmatpush1.msra.mxu0 0.0
    %188 = vmatprep.subr.mxu0 0.0
    %189 = vmatpush1.msra.mxu0 0.0
    %190 = vmatprep.subr.mxu0 0.0
    %191 = vmatpush1.msra.mxu0 0.0
    %192 = vmatprep.subr.mxu0 0.0
    %193 = vmatpush1.msra.mxu0 0.0
    %194 = vmatprep.subr.mxu0 0.0
    %195 = vmatpush1.msra.mxu0 0.0
    %196 = vmatprep.subr.mxu0 0.0
    %197 = vmatpush1.msra.mxu0 0.0
    %198 = vmatprep.subr.mxu0 0.0
    %199 = vmatpush1.msra.mxu0 0.0
    %200 = vmatprep.subr.mxu0 0.0
    %201 = vmatpush1.msra.mxu0 0.0
    %202 = vmatprep.subr.mxu0 0.0
    %203 = vmatpush1.msra.mxu0 0.0
    %204 = vmatprep.subr.mxu0 0.0
    %205 = vmatpush1.msra.mxu0 0.0
    %206 = vmatprep.subr.mxu0 %v84
    %207 = vmatpush1.msra.mxu0 %v83
    %208 = vmatprep.subr.mxu0 %v80
    %209 = vmatpush1.msra.mxu0 %v79
    %210 = vmatprep.subr.mxu0 %v76
    %211 = vmatpush1.msra.mxu0 %v75
    %212 = vmatprep.subr.mxu0 %v72
    %213 = vmatpush1.msra.mxu0 %v71
    %214 = vmatprep.subr.mxu0 0.0
    %215 = vmatpush2.msra.mxu0 0.0
    %216 = vmatprep.subr.mxu0 0.0
    %217 = vmatpush2.msra.mxu0 0.0
    %218 = vmatprep.subr.mxu0 0.0
    %219 = vmatpush2.msra.mxu0 0.0
    %220 = vmatprep.subr.mxu0 0.0
    %221 = vmatpush2.msra.mxu0 0.0
    %222 = vmatprep.subr.mxu0 0.0
    %223 = vmatpush2.msra.mxu0 0.0
    %224 = vmatprep.subr.mxu0 0.0
    %225 = vmatpush2.msra.mxu0 0.0
    %226 = vmatprep.subr.mxu0 0.0
    %227 = vmatpush2.msra.mxu0 0.0
    %228 = vmatprep.subr.mxu0 0.0
    %229 = vmatpush2.msra.mxu0 0.0
    %230 = vmatprep.subr.mxu0 0.0
    %231 = vmatpush2.msra.mxu0 0.0
    %232 = vmatprep.subr.mxu0 0.0
    %233 = vmatpush2.msra.mxu0 0.0
    %234 = vmatprep.subr.mxu0 0.0
    %235 = vmatpush2.msra.mxu0 0.0
    %236 = vmatprep.subr.mxu0 0.0
    %237 = vmatpush2.msra.mxu0 0.0
    %238 = vmatprep.subr.mxu0 0.0
    %239 = vmatpush2.msra.mxu0 0.0
    %240 = vmatprep.subr.mxu0 0.0
    %241 = vmatpush2.msra.mxu0 0.0
    %242 = vmatprep.subr.mxu0 0.0
    %243 = vmatpush2.msra.mxu0 0.0
    %244 = vmatprep.subr.mxu0 0.0
    %245 = vmatpush2.msra.mxu0 0.0
    %246 = vmatprep.mubr.f32.mxu0 0.0
    %247 = vmatmul.mubr.f32.gmra.mxu0 %v109
    %v248 = vpop.f32.mrf.mxu0
    %v249 = vadd.f32 %v98, %v248
    %v250 = vpop.f32.mrf.mxu0
    %v251 = vadd.f32 %v102, %v250
    %252 = vdwg.mxu0
    %v253 = vmax.f32 %v178, 0.0
    %v254 = vmax.f32 %v180, 0.0
    %v255 = vmax.f32 %v249, 0.0
    %v256 = vmax.f32 %v251, 0.0
    %v257 = vld [vmem:[#allocation8] sm:$0xff]
    %v258 = vld [vmem:[#allocation8 + $0x8] sm:$0xff]
    %v259 = vld [vmem:[#allocation8 + $0x10] sm:$0xff]
    %v260 = vld [vmem:[#allocation8 + $0x18] sm:$0xff]
    %v261 = vld [vmem:[#allocation8 + $0x20] sm:$0xff]
    %v262 = vld [vmem:[#allocation8 + $0x28] sm:$0xff]
    %v263 = vld [vmem:[#allocation8 + $0x30] sm:$0xff]
    %v264 = vld [vmem:[#allocation8 + $0x38] sm:$0xff]
    %v265 = vld [vmem:[#allocation8 + $0x40] sm:$0xff]
    %v266 = vld [vmem:[#allocation8 + $0x48] sm:$0xff]
    %v267 = vld [vmem:[#allocation8 + $0x50] sm:$0xff]
    %v268 = vld [vmem:[#allocation8 + $0x58] sm:$0xff]
    %v269 = vld [vmem:[#allocation8 + $0x60] sm:$0xff]
    %v270 = vld [vmem:[#allocation8 + $0x68] sm:$0xff]
    %v271 = vld [vmem:[#allocation8 + $0x70] sm:$0xff]
    %v272 = vld [vmem:[#allocation8 + $0x78] sm:$0xff]
    %v273 = vld [vmem:[#allocation8 + $0x80] sm:$0xff]
    %v274 = vld [vmem:[#allocation8 + $0x88] sm:$0xff]
    %v275 = vld [vmem:[#allocation8 + $0x90] sm:$0xff]
    %v276 = vld [vmem:[#allocation8 + $0x98] sm:$0xff]
    %v277 = vld [vmem:[#allocation8 + $0xa0] sm:$0xff]
    %v278 = vld [vmem:[#allocation8 + $0xa8] sm:$0xff]
    %v279 = vld [vmem:[#allocation8 + $0xb0] sm:$0xff]
    %v280 = vld [vmem:[#allocation8 + $0xb8] sm:$0xff]
    %v281 = vld [vmem:[#allocation8 + $0xc0] sm:$0xff]
    %v282 = vld [vmem:[#allocation8 + $0xc8] sm:$0xff]
    %v283 = vld [vmem:[#allocation8 + $0xd0] sm:$0xff]
    %v284 = vld [vmem:[#allocation8 + $0xd8] sm:$0xff]
    %v285 = vld [vmem:[#allocation8 + $0xe0] sm:$0xff]
    %v286 = vld [vmem:[#allocation8 + $0xe8] sm:$0xff]
    %v287 = vld [vmem:[#allocation8 + $0xf0] sm:$0xff]
    %v288 = vld [vmem:[#allocation8 + $0xf8] sm:$0xff]
    %v289 = vld [vmem:[#allocation8 + $0x100] sm:$0xff]
    %v290 = vld [vmem:[#allocation8 + $0x108] sm:$0xff]
    %v291 = vld [vmem:[#allocation8 + $0x110] sm:$0xff]
    %v292 = vld [vmem:[#allocation8 + $0x118] sm:$0xff]
    %v293 = vld [vmem:[#allocation8 + $0x120] sm:$0xff]
    %v294 = vld [vmem:[#allocation8 + $0x128] sm:$0xff]
    %v295 = vld [vmem:[#allocation8 + $0x130] sm:$0xff]
    %v296 = vld [vmem:[#allocation8 + $0x138] sm:$0xff]
    %v297 = vld [vmem:[#allocation8 + $0x140] sm:$0xff]
    %v298 = vld [vmem:[#allocation8 + $0x148] sm:$0xff]
    %v299 = vld [vmem:[#allocation8 + $0x150] sm:$0xff]
    %v300 = vld [vmem:[#allocation8 + $0x158] sm:$0xff]
    %v301 = vld [vmem:[#allocation8 + $0x160] sm:$0xff]
    %v302 = vld [vmem:[#allocation8 + $0x168] sm:$0xff]
    %v303 = vld [vmem:[#allocation8 + $0x170] sm:$0xff]
    %v304 = vld [vmem:[#allocation8 + $0x178] sm:$0xff]
    %v305 = vld [vmem:[#allocation8 + $0x180] sm:$0xff]
    %v306 = vld [vmem:[#allocation8 + $0x188] sm:$0xff]
    %v307 = vld [vmem:[#allocation8 + $0x190] sm:$0xff]
    %v308 = vld [vmem:[#allocation8 + $0x198] sm:$0xff]
    %v309 = vld [vmem:[#allocation8 + $0x1a0] sm:$0xff]
    %v310 = vld [vmem:[#allocation8 + $0x1a8] sm:$0xff]
    %v311 = vld [vmem:[#allocation8 + $0x1b0] sm:$0xff]
    %v312 = vld [vmem:[#allocation8 + $0x1b8] sm:$0xff]
    %v313 = vld [vmem:[#allocation8 + $0x1c0] sm:$0xff]
    %v314 = vld [vmem:[#allocation8 + $0x1c8] sm:$0xff]
    %v315 = vld [vmem:[#allocation8 + $0x1d0] sm:$0xff]
    %v316 = vld [vmem:[#allocation8 + $0x1d8] sm:$0xff]
    %v317 = vld [vmem:[#allocation8 + $0x1e0] sm:$0xff]
    %v318 = vld [vmem:[#allocation8 + $0x1e8] sm:$0xff]
    %v319 = vld [vmem:[#allocation8 + $0x1f0] sm:$0xff]
    %v320 = vld [vmem:[#allocation8 + $0x1f8] sm:$0xff]
    %v321 = vld [vmem:[%s4] sm:$0x1]
    %v323 = vlaneseq
    %v324 = vshrl.u32 %v323, 7
    %v325 = vsub.s32 0, %v324
    %v326 = vrot.slane %v321, %v325
    %328 = vmatprep.subr.mxu0 0.0
    %329 = vmatpush1.msra.mxu0 %v272
    %330 = vmatprep.subr.mxu0 0.0
    %331 = vmatpush1.msra.mxu0 %v271
    %332 = vmatprep.subr.mxu0 0.0
    %333 = vmatpush1.msra.mxu0 %v270
    %334 = vmatprep.subr.mxu0 0.0
    %335 = vmatpush1.msra.mxu0 %v269
    %336 = vmatprep.subr.mxu0 0.0
    %337 = vmatpush1.msra.mxu0 %v268
    %338 = vmatprep.subr.mxu0 0.0
    %339 = vmatpush1.msra.mxu0 %v267
    %340 = vmatprep.subr.mxu0 0.0
    %341 = vmatpush1.msra.mxu0 %v266
    %342 = vmatprep.subr.mxu0 0.0
    %343 = vmatpush1.msra.mxu0 %v265
    %344 = vmatprep.subr.mxu0 0.0
    %345 = vmatpush1.msra.mxu0 %v264
    %346 = vmatprep.subr.mxu0 0.0
    %347 = vmatpush1.msra.mxu0 %v263
    %348 = vmatprep.subr.mxu0 0.0
    %349 = vmatpush1.msra.mxu0 %v262
    %350 = vmatprep.subr.mxu0 0.0
    %351 = vmatpush1.msra.mxu0 %v261
    %352 = vmatprep.subr.mxu0 0.0
    %353 = vmatpush1.msra.mxu0 %v260
    %354 = vmatprep.subr.mxu0 0.0
    %355 = vmatpush1.msra.mxu0 %v259
    %356 = vmatprep.subr.mxu0 0.0
    %357 = vmatpush1.msra.mxu0 %v258
    %358 = vmatprep.subr.mxu0 0.0
    %359 = vmatpush1.msra.mxu0 %v257
    %360 = vmatprep.subr.mxu0 0.0
    %361 = vmatpush2.msra.mxu0 %v288
    %362 = vmatprep.subr.mxu0 0.0
    %363 = vmatpush2.msra.mxu0 %v287
    %364 = vmatprep.subr.mxu0 0.0
    %365 = vmatpush2.msra.mxu0 %v286
    %366 = vmatprep.subr.mxu0 0.0
    %367 = vmatpush2.msra.mxu0 %v285
    %368 = vmatprep.subr.mxu0 0.0
    %369 = vmatpush2.msra.mxu0 %v284
    %370 = vmatprep.subr.mxu0 0.0
    %371 = vmatpush2.msra.mxu0 %v283
    %372 = vmatprep.subr.mxu0 0.0
    %373 = vmatpush2.msra.mxu0 %v282
    %374 = vmatprep.subr.mxu0 0.0
    %375 = vmatpush2.msra.mxu0 %v281
    %376 = vmatprep.subr.mxu0 0.0
    %377 = vmatpush2.msra.mxu0 %v280
    %378 = vmatprep.subr.mxu0 0.0
    %379 = vmatpush2.msra.mxu0 %v279
    %380 = vmatprep.subr.mxu0 0.0
    %381 = vmatpush2.msra.mxu0 %v278
    %382 = vmatprep.subr.mxu0 0.0
    %383 = vmatpush2.msra.mxu0 %v277
    %384 = vmatprep.subr.mxu0 0.0
    %385 = vmatpush2.msra.mxu0 %v276
    %386 = vmatprep.subr.mxu0 0.0
    %387 = vmatpush2.msra.mxu0 %v275
    %388 = vmatprep.subr.mxu0 0.0
    %389 = vmatpush2.msra.mxu0 %v274
    %390 = vmatprep.subr.mxu0 0.0
    %391 = vmatpush2.msra.mxu0 %v273
    %392 = vmatprep.mubr.f32.mxu0 %v254
    %393 = vmatmul.mubr.f32.gmra.mxu0 %v253
    %v394 = vpop.f32.mrf.mxu0
    %v395 = vadd.f32 %v326, %v394
    %v396 = vpop.f32.mrf.mxu0
    %397 = vdwg.mxu0
    %398 = vmatprep.subr.mxu0 0.0
    %399 = vmatpush1.msra.mxu0 %v304
    %400 = vmatprep.subr.mxu0 0.0
    %401 = vmatpush1.msra.mxu0 %v303
    %402 = vmatprep.subr.mxu0 0.0
    %403 = vmatpush1.msra.mxu0 %v302
    %404 = vmatprep.subr.mxu0 0.0
    %405 = vmatpush1.msra.mxu0 %v301
    %406 = vmatprep.subr.mxu0 0.0
    %407 = vmatpush1.msra.mxu0 %v300
    %408 = vmatprep.subr.mxu0 0.0
    %409 = vmatpush1.msra.mxu0 %v299
    %410 = vmatprep.subr.mxu0 0.0
    %411 = vmatpush1.msra.mxu0 %v298
    %412 = vmatprep.subr.mxu0 0.0
    %413 = vmatpush1.msra.mxu0 %v297
    %414 = vmatprep.subr.mxu0 0.0
    %415 = vmatpush1.msra.mxu0 %v296
    %416 = vmatprep.subr.mxu0 0.0
    %417 = vmatpush1.msra.mxu0 %v295
    %418 = vmatprep.subr.mxu0 0.0
    %419 = vmatpush1.msra.mxu0 %v294
    %420 = vmatprep.subr.mxu0 0.0
    %421 = vmatpush1.msra.mxu0 %v293
    %422 = vmatprep.subr.mxu0 0.0
    %423 = vmatpush1.msra.mxu0 %v292
    %424 = vmatprep.subr.mxu0 0.0
    %425 = vmatpush1.msra.mxu0 %v291
    %426 = vmatprep.subr.mxu0 0.0
    %427 = vmatpush1.msra.mxu0 %v290
    %428 = vmatprep.subr.mxu0 0.0
    %429 = vmatpush1.msra.mxu0 %v289
    %430 = vmatprep.subr.mxu0 0.0
    %431 = vmatpush2.msra.mxu0 %v320
    %432 = vmatprep.subr.mxu0 0.0
    %433 = vmatpush2.msra.mxu0 %v319
    %434 = vmatprep.subr.mxu0 0.0
    %435 = vmatpush2.msra.mxu0 %v318
    %436 = vmatprep.subr.mxu0 0.0
    %437 = vmatpush2.msra.mxu0 %v317
    %438 = vmatprep.subr.mxu0 0.0
    %439 = vmatpush2.msra.mxu0 %v316
    %440 = vmatprep.subr.mxu0 0.0
    %441 = vmatpush2.msra.mxu0 %v315
    %442 = vmatprep.subr.mxu0 0.0
    %443 = vmatpush2.msra.mxu0 %v314
    %444 = vmatprep.subr.mxu0 0.0
    %445 = vmatpush2.msra.mxu0 %v313
    %446 = vmatprep.subr.mxu0 0.0
    %447 = vmatpush2.msra.mxu0 %v312
    %448 = vmatprep.subr.mxu0 0.0
    %449 = vmatpush2.msra.mxu0 %v311
    %450 = vmatprep.subr.mxu0 0.0
    %451 = vmatpush2.msra.mxu0 %v310
    %452 = vmatprep.subr.mxu0 0.0
    %453 = vmatpush2.msra.mxu0 %v309
    %454 = vmatprep.subr.mxu0 0.0
    %455 = vmatpush2.msra.mxu0 %v308
    %456 = vmatprep.subr.mxu0 0.0
    %457 = vmatpush2.msra.mxu0 %v307
    %458 = vmatprep.subr.mxu0 0.0
    %459 = vmatpush2.msra.mxu0 %v306
    %460 = vmatprep.subr.mxu0 0.0
    %461 = vmatpush2.msra.mxu0 %v305
    %462 = vmatprep.mubr.f32.mxu0 %v256
    %463 = vmatmul.mubr.f32.gmra.mxu0 %v255
    %v464 = vpop.f32.mrf.mxu0
    %v465 = vadd.f32 %v395, %v464
    %v466 = vpop.f32.mrf.mxu0
    %467 = vdwg.mxu0
    %v468 = vmax.f32 %v465, 0.0
    %v469 = vld [vmem:[%s5] sm:$0x1]
    %v471 = vlaneseq
    %v472 = vshrl.u32 %v471, 7
    %v473 = vsub.s32 0, %v472
    %v474 = vrot.slane %v469, %v473
    %v476 = vmul.f32 %v468, %v474
    %477 = vadd.xlane.f32.xlu0 %v476
    %v478 = vpop.xlane.xlu0 %477
    %v479 = vld [vmem:[#allocation2] sm:$0x1]
    %481 = vset.pattern.permute.xlu0 0
    %482 = vperm.xlu0 %481, %v479
    %v483 = vpop.permute.xlu0 %482
    %v485 = vlaneseq
    %v486 = vshrl.u32 %v485, 7
    %v487 = vsub.s32 0, %v486
    %v488 = vrot.slane %v483, %v487
    %v489 = vadd.f32 %v478, %v488
    %v491 = vlaneseq
    %v492 = vand.u32 %v491, 127
    %v493 = vlaneseq
    %v494 = vshrl.u32 %v493, 7
    %v495 = vsub.s32 %v492, %v494
    %v496 = vrot.slane %v489, %v495
    %vm498 = vcmask 57344
    %499 = vst.msk [vmem:[#allocation9] sm:$0x1] %vm498, %v496
    // Predicated region
    $region42: #{tpu_custom_call.1} parent=1 // pred_check
      _
    $region43: #{tpu_custom_call.1} parent=1 // pred_check_branch
      %501 = sbr.rel (0) target = $region45
    $region44: #{tpu_custom_call.1} parent=1 // pred_region
      %s503 = ssub.s32 16, 16
      %504 = vsyncadd [#allocation5], %s503
      %s506 = sshll.u32 [#allocation9], 4
      %s507 = int_to_ptr.vmem [resolvable:$true] %s506
      %509 = dma.vmem_to_hbm [thread:$0]  %s507, 16, %s7, [#allocation5]
    $region45: #{tpu_custom_call.1} parent=1 // pred_fallthru
      _
    // Predicated region
    $region46: #{tpu_custom_call.1} parent=1 // pred_check
      _
    $region47: #{tpu_custom_call.1} parent=1 // pred_check_branch
      %511 = sbr.rel (0) target = $region49
    $region48: #{tpu_custom_call.1} parent=1 // pred_region
      %512 = dma.done [#allocation5], 16
    $region49: #{tpu_custom_call.1} parent=1 // pred_fallthru
      _
    %513 = vsyncpa [#allocation4], 1
    %514 = vsyncpa [#allocation7], 1
    %515 = vsyncpa [#allocation5], 1

</llo_original>
